<compile_context>
chip_gen: v5e
topology: v5e:2x2
jax: 0.10.0
libtpu: 0.0.40
codegen_flags: <defaults>
</compile_context>

<pallas_src>
import jax
import jax.numpy as jnp
from jax import lax
from jax.experimental import pallas as pl
from jax.experimental.pallas import tpu as pltpu


def _round_up(n, m):
    return (n + m - 1) // m * m


def _mlp_kernel(x_ref, w1_ref, b1_ref, w2_ref, b2_ref, w3_ref, b3_ref, o_ref):
    """One batch tile of the MLP in a lane-dense transposed layout.

    x_ref  : (TB, in_dim)   batch-major input tile (cast to compute dtype here)
    wN_ref : (out_f, in_f)  PyTorch Linear weight layout (compute dtype)
    bN_ref : (out_f, 1)     column bias (f32)
    o_ref  : (out_dim, TB)  transposed, lane-dense output tile (f32)
    """
    cdt = w1_ref.dtype  # compute dtype for MXU operands (bf16 by default)
    x = x_ref[...].astype(cdt)                                   # (TB, in)

    # h1 = relu(W1 @ x^T + b1) -> (36, TB); contract over in_dim (trans_b dot).
    h1 = lax.dot_general(w1_ref[...], x, (((1,), (1,)), ((), ())),
                         preferred_element_type=jnp.float32)
    h1 = jnp.maximum(h1 + b1_ref[...], 0.0)                      # f32 VPU work

    # h2 = relu(W2 @ h1 + b2) -> (18, TB)
    h2 = jnp.dot(w2_ref[...], h1.astype(cdt),
                 preferred_element_type=jnp.float32)
    h2 = jnp.maximum(h2 + b2_ref[...], 0.0)

    # out = W3 @ h2 + b3 -> (out_dim, TB); lane-dense store.
    out = jnp.dot(w3_ref[...], h2.astype(cdt),
                  preferred_element_type=jnp.float32)
    o_ref[...] = (out + b3_ref[...]).astype(o_ref.dtype)


def lsv_pred_nn_forward(x, params, *, compute_dtype=jnp.bfloat16, tb_max=1024):
    """Forward pass of LSV_pred_NN.

    x      : (batch, input_dim) array.
    params : dict with w1 (36,in), b1 (36,1), w2 (18,36), b2 (18,1),
             w3 (out,18), b3 (out,1)   -- PyTorch Linear storage layout.
    Returns (batch, out_dim) float32.
    """
    w1, b1 = params["w1"], params["b1"]
    w2, b2 = params["w2"], params["b2"]
    w3, b3 = params["w3"], params["b3"]
    batch, in_dim = x.shape
    out_dim = w3.shape[0]

    # Batch tile: multiple of 128 (lane-dense transposed output), capped at
    # tb_max so double-buffered tiles stay far inside v7x's 64 MiB VMEM
    # (2 * TB*in_dim*4B for x + 2 * out_dim*TB*4B for out is < 0.4 MiB here).
    bp = _round_up(batch, 128)
    tb = min(tb_max, bp)
    bp = _round_up(bp, tb)
    if bp != batch:
        x = jnp.pad(x, ((0, bp - batch), (0, 0)))

    # MXU operands in compute dtype; biases / accumulation stay f32.
    # TODO(synk): if the producer can supply x in bf16, HBM traffic halves.
    cw1 = w1.astype(compute_dtype)
    cw2 = w2.astype(compute_dtype)
    cw3 = w3.astype(compute_dtype)

    const2d = lambda a: pl.BlockSpec(a.shape, lambda i: (0, 0))

    out_t = pl.pallas_call(
        _mlp_kernel,
        out_shape=jax.ShapeDtypeStruct((out_dim, bp), jnp.float32),
        grid=(bp // tb,),
        in_specs=[
            pl.BlockSpec((tb, in_dim), lambda i: (i, 0)),  # x tile (pipelined)
            const2d(cw1), const2d(b1),                     # VMEM-resident
            const2d(cw2), const2d(b2),
            const2d(cw3), const2d(b3),
        ],
        out_specs=pl.BlockSpec((out_dim, tb), lambda i: (0, i)),
        compiler_params=pltpu.CompilerParams(
            dimension_semantics=("parallel",)),
    )(x, cw1, b1, cw2, b2, cw3, b3)

    # Back to PyTorch's (batch, out_dim) layout; drop padded rows.
    return out_t[:, :batch].T


def init_params(key, input_dim, output_dim=10):
    """Deterministic init mimicking PyTorch Linear (uniform +-1/sqrt(fan_in)),
    stored in PyTorch layout: weight (fan_out, fan_in), bias (fan_out, 1)."""
    dims = [(input_dim, 36), (36, 18), (18, output_dim)]
    params = {}
    for i, (fan_in, fan_out) in enumerate(dims, start=1):
        key, kw, kb = jax.random.split(key, 3)
        bound = 1.0 / jnp.sqrt(float(fan_in))
        params[f"w{i}"] = jax.random.uniform(
            kw, (fan_out, fan_in), jnp.float32, -bound, bound)
        params[f"b{i}"] = jax.random.uniform(
            kb, (fan_out, 1), jnp.float32, -bound, bound)
    return params


def _reference_forward(x, params, compute_dtype=jnp.float32):
    """Pure-JAX reference (batch-major, like the PyTorch module)."""
    c = lambda a: a.astype(compute_dtype)
    h1 = jnp.maximum(
        jnp.dot(c(x), c(params["w1"]).T, preferred_element_type=jnp.float32)
        + params["b1"].T, 0.0)
    h2 = jnp.maximum(
        jnp.dot(c(h1), c(params["w2"]).T, preferred_element_type=jnp.float32)
        + params["b2"].T, 0.0)
    return (jnp.dot(c(h2), c(params["w3"]).T, preferred_element_type=jnp.float32)
            + params["b3"].T)


if __name__ == "__main__":
    key = jax.random.PRNGKey(0)
    batch, input_dim, output_dim = 8, 32, 10

    key, kx = jax.random.split(key)
    x = jax.random.normal(kx, (batch, input_dim), jnp.float32)
    params = init_params(key, input_dim, output_dim)

    out = jax.jit(lsv_pred_nn_forward)(x, params)
    out = jax.block_until_ready(out)
    assert out.shape == (batch, output_dim)

    # Matched-precision reference (bf16 MXU operands, f32 accumulation).
    ref_bf16 = _reference_forward(x, params, jnp.bfloat16)
    assert jnp.allclose(out, ref_bf16, atol=2e-2, rtol=2e-2)

    # Loose sanity check against the full-f32 PyTorch-equivalent math.
    ref_f32 = _reference_forward(x, params, jnp.float32)
    assert jnp.allclose(out, ref_f32, atol=1e-1, rtol=1e-1)

    print("KERNEL_OK")
</pallas_src>

<mosaic_0001>
module attributes {stable_mosaic.version = 11 : i64} {
  func.func @_mlp_kernel(%arg0: i32, %arg1: memref<128x32xf32, #tpu.memory_space<vmem>>, %arg2: memref<36x32xbf16, #tpu.memory_space<vmem>>, %arg3: memref<36x1xf32, #tpu.memory_space<vmem>>, %arg4: memref<18x36xbf16, #tpu.memory_space<vmem>>, %arg5: memref<18x1xf32, #tpu.memory_space<vmem>>, %arg6: memref<10x18xbf16, #tpu.memory_space<vmem>>, %arg7: memref<10x1xf32, #tpu.memory_space<vmem>>, %arg8: memref<10x128xf32, #tpu.memory_space<vmem>>) attributes {dimension_semantics = [#tpu.dimension_semantics<parallel>], iteration_bounds = array<i64: 1>, scalar_prefetch = 0 : i64, scratch_operands = 0 : i64, tpu.core_type = #tpu.core_type<tc>, window_params = [{transform_indices = @transform_0, window_bounds = array<i64: 128, 32>}, {pipeline_mode = #tpu.pipeline_mode<synchronous>, transform_indices = @transform_1, window_bounds = array<i64: 36, 32>}, {pipeline_mode = #tpu.pipeline_mode<synchronous>, transform_indices = @transform_2, window_bounds = array<i64: 36, 1>}, {pipeline_mode = #tpu.pipeline_mode<synchronous>, transform_indices = @transform_3, window_bounds = array<i64: 18, 36>}, {pipeline_mode = #tpu.pipeline_mode<synchronous>, transform_indices = @transform_4, window_bounds = array<i64: 18, 1>}, {pipeline_mode = #tpu.pipeline_mode<synchronous>, transform_indices = @transform_5, window_bounds = array<i64: 10, 18>}, {pipeline_mode = #tpu.pipeline_mode<synchronous>, transform_indices = @transform_6, window_bounds = array<i64: 10, 1>}, {transform_indices = @transform_7, window_bounds = array<i64: 10, 128>}]} {
    %c0 = arith.constant 0 : index
    %c0_0 = arith.constant 0 : index
    %0 = vector.load %arg1[%c0, %c0_0] : memref<128x32xf32, #tpu.memory_space<vmem>>, vector<128x32xf32>
    %1 = arith.truncf %0 : vector<128x32xf32> to vector<128x32xbf16>
    %c0_1 = arith.constant 0 : index
    %c0_2 = arith.constant 0 : index
    %2 = vector.load %arg2[%c0_1, %c0_2] : memref<36x32xbf16, #tpu.memory_space<vmem>>, vector<36x32xbf16>
    %cst = arith.constant dense<0.000000e+00> : vector<36x128xf32>
    %3 = tpu.matmul %2, %1, %cst {dimension_numbers = #tpu.dot_dimension_numbers<[1], [1], [0], [0], [0, 0, 1, 0], [], []>} : vector<36x32xbf16>, vector<128x32xbf16>, vector<36x128xf32> -> vector<36x128xf32>
    %c0_3 = arith.constant 0 : index
    %c0_4 = arith.constant 0 : index
    %4 = vector.load %arg3[%c0_3, %c0_4] : memref<36x1xf32, #tpu.memory_space<vmem>>, vector<36x1xf32>
    %5 = vector.broadcast %4 : vector<36x1xf32> to vector<36x128xf32>
    %6 = arith.addf %3, %5 : vector<36x128xf32>
    %cst_5 = arith.constant 0.000000e+00 : f32
    %7 = vector.broadcast %cst_5 : f32 to vector<36x128xf32>
    %8 = arith.maximumf %6, %7 : vector<36x128xf32>
    %c0_6 = arith.constant 0 : index
    %c0_7 = arith.constant 0 : index
    %9 = vector.load %arg4[%c0_6, %c0_7] : memref<18x36xbf16, #tpu.memory_space<vmem>>, vector<18x36xbf16>
    %10 = arith.truncf %8 : vector<36x128xf32> to vector<36x128xbf16>
    %cst_8 = arith.constant dense<0.000000e+00> : vector<18x128xf32>
    %11 = tpu.matmul %9, %10, %cst_8 {dimension_numbers = #tpu.dot_dimension_numbers<[1], [0], [0], [1], [0, 0, 1, 1], [], []>} : vector<18x36xbf16>, vector<36x128xbf16>, vector<18x128xf32> -> vector<18x128xf32>
    %c0_9 = arith.constant 0 : index
    %c0_10 = arith.constant 0 : index
    %12 = vector.load %arg5[%c0_9, %c0_10] : memref<18x1xf32, #tpu.memory_space<vmem>>, vector<18x1xf32>
    %13 = vector.broadcast %12 : vector<18x1xf32> to vector<18x128xf32>
    %14 = arith.addf %11, %13 : vector<18x128xf32>
    %cst_11 = arith.constant 0.000000e+00 : f32
    %15 = vector.broadcast %cst_11 : f32 to vector<18x128xf32>
    %16 = arith.maximumf %14, %15 : vector<18x128xf32>
    %c0_12 = arith.constant 0 : index
    %c0_13 = arith.constant 0 : index
    %17 = vector.load %arg6[%c0_12, %c0_13] : memref<10x18xbf16, #tpu.memory_space<vmem>>, vector<10x18xbf16>
    %18 = arith.truncf %16 : vector<18x128xf32> to vector<18x128xbf16>
    %cst_14 = arith.constant dense<0.000000e+00> : vector<10x128xf32>
    %19 = tpu.matmul %17, %18, %cst_14 {dimension_numbers = #tpu.dot_dimension_numbers<[1], [0], [0], [1], [0, 0, 1, 1], [], []>} : vector<10x18xbf16>, vector<18x128xbf16>, vector<10x128xf32> -> vector<10x128xf32>
    %c0_15 = arith.constant 0 : index
    %c0_16 = arith.constant 0 : index
    %20 = vector.load %arg7[%c0_15, %c0_16] : memref<10x1xf32, #tpu.memory_space<vmem>>, vector<10x1xf32>
    %21 = vector.broadcast %20 : vector<10x1xf32> to vector<10x128xf32>
    %22 = arith.addf %19, %21 : vector<10x128xf32>
    %c0_17 = arith.constant 0 : index
    %c0_18 = arith.constant 0 : index
    %23 = vector.load %arg8[%c0_17, %c0_18] : memref<10x128xf32, #tpu.memory_space<vmem>>, vector<10x128xf32>
    tpu.vector_store %arg8[%c0_17, %c0_18], %22 {strides = array<i32>} : memref<10x128xf32, #tpu.memory_space<vmem>>, vector<10x128xf32>,
    return
  }
  func.func @transform_0(%arg0: i32) -> (i32, i32) {
    %c0_i32 = arith.constant 0 : i32
    %c0_i32_0 = arith.constant 0 : i32
    return %arg0, %c0_i32 : i32, i32
  }
  func.func @transform_1(%arg0: i32) -> (i32, i32) {
    %c0_i32 = arith.constant 0 : i32
    %c0_i32_0 = arith.constant 0 : i32
    %c0_i32_1 = arith.constant 0 : i32
    return %c0_i32, %c0_i32_0 : i32, i32
  }
  func.func @transform_2(%arg0: i32) -> (i32, i32) {
    %c0_i32 = arith.constant 0 : i32
    %c0_i32_0 = arith.constant 0 : i32
    %c0_i32_1 = arith.constant 0 : i32
    return %c0_i32, %c0_i32_0 : i32, i32
  }
  func.func @transform_3(%arg0: i32) -> (i32, i32) {
    %c0_i32 = arith.constant 0 : i32
    %c0_i32_0 = arith.constant 0 : i32
    %c0_i32_1 = arith.constant 0 : i32
    return %c0_i32, %c0_i32_0 : i32, i32
  }
  func.func @transform_4(%arg0: i32) -> (i32, i32) {
    %c0_i32 = arith.constant 0 : i32
    %c0_i32_0 = arith.constant 0 : i32
    %c0_i32_1 = arith.constant 0 : i32
    return %c0_i32, %c0_i32_0 : i32, i32
  }
  func.func @transform_5(%arg0: i32) -> (i32, i32) {
    %c0_i32 = arith.constant 0 : i32
    %c0_i32_0 = arith.constant 0 : i32
    %c0_i32_1 = arith.constant 0 : i32
    return %c0_i32, %c0_i32_0 : i32, i32
  }
  func.func @transform_6(%arg0: i32) -> (i32, i32) {
    %c0_i32 = arith.constant 0 : i32
    %c0_i32_0 = arith.constant 0 : i32
    %c0_i32_1 = arith.constant 0 : i32
    return %c0_i32, %c0_i32_0 : i32, i32
  }
  func.func @transform_7(%arg0: i32) -> (i32, i32) {
    %c0_i32 = arith.constant 0 : i32
    %c0_i32_0 = arith.constant 0 : i32
    return %c0_i32, %arg0 : i32, i32
  }
}

</mosaic_0001>

<llo_original>
// kernel: lsv_pred_nn_forward.1
$region0: #{lsv_pred_nn_forward.1}
  #allocation0 [shape = 'u32[]', space=smem, size = 0x4, offset = 0x4, fixed_abs, tag = 'smem constant byte address 0x4 - core index']
  #allocation1 [shape = 'u32[72,128]{1,0:T(1,128)}', space=vmem, size = 0x9000, scoped, tag = 'internal scratch']
  %s0 = inlined_call_operand.vmem [shape: f32[128,32], index: 0, kind: input, shape index: {}]
  %s1 = inlined_call_operand.vmem [shape: bf16[36,32], index: 1, kind: input, shape index: {}]
  %s2 = inlined_call_operand.vmem [shape: f32[36,1], index: 2, kind: input, shape index: {}]
  %s3 = inlined_call_operand.vmem [shape: bf16[18,36], index: 3, kind: input, shape index: {}]
  %s4 = inlined_call_operand.vmem [shape: f32[18,1], index: 4, kind: input, shape index: {}]
  %s5 = inlined_call_operand.vmem [shape: bf16[10,18], index: 5, kind: input, shape index: {}]
  %s6 = inlined_call_operand.vmem [shape: f32[10,1], index: 6, kind: input, shape index: {}]
  %s7 = inlined_call_operand.vmem [shape: f32[10,128], index: 7, kind: output, shape index: {}]
  %s8 = sld [smem:[#allocation0]]
  $region38: #{lsv_pred_nn_forward.1} parent=0
    _
  %s10 = ssub.s32 1, %s8
  %s11 = scalar_select 0, %s10, %s8
  // Predicated region
  $region2: #{lsv_pred_nn_forward.1} parent=0 // pred_check
    _
  $region3: #{lsv_pred_nn_forward.1} parent=0 // pred_check_branch
    %13 = sbr.rel (0) target = $region5
  $region4: #{lsv_pred_nn_forward.1} parent=0 // pred_region
    _
  $region5: #{lsv_pred_nn_forward.1} parent=0 // pred_fallthru
    _
  // Predicated region
  $region6: #{lsv_pred_nn_forward.1} parent=0 // pred_check
    _
  $region7: #{lsv_pred_nn_forward.1} parent=0 // pred_check_branch
    %15 = sbr.rel (0) target = $region9
  $region8: #{lsv_pred_nn_forward.1} parent=0 // pred_region
    _
  $region9: #{lsv_pred_nn_forward.1} parent=0 // pred_fallthru
    _
  // Predicated region
  $region10: #{lsv_pred_nn_forward.1} parent=0 // pred_check
    _
  $region11: #{lsv_pred_nn_forward.1} parent=0 // pred_check_branch
    %17 = sbr.rel (0) target = $region13
  $region12: #{lsv_pred_nn_forward.1} parent=0 // pred_region
    _
  $region13: #{lsv_pred_nn_forward.1} parent=0 // pred_fallthru
    _
  // Predicated region
  $region14: #{lsv_pred_nn_forward.1} parent=0 // pred_check
    _
  $region15: #{lsv_pred_nn_forward.1} parent=0 // pred_check_branch
    %19 = sbr.rel (0) target = $region17
  $region16: #{lsv_pred_nn_forward.1} parent=0 // pred_region
    _
  $region17: #{lsv_pred_nn_forward.1} parent=0 // pred_fallthru
    _
  // Predicated region
  $region18: #{lsv_pred_nn_forward.1} parent=0 // pred_check
    _
  $region19: #{lsv_pred_nn_forward.1} parent=0 // pred_check_branch
    %21 = sbr.rel (0) target = $region21
  $region20: #{lsv_pred_nn_forward.1} parent=0 // pred_region
    _
  $region21: #{lsv_pred_nn_forward.1} parent=0 // pred_fallthru
    _
  // Predicated region
  $region22: #{lsv_pred_nn_forward.1} parent=0 // pred_check
    _
  $region23: #{lsv_pred_nn_forward.1} parent=0 // pred_check_branch
    %23 = sbr.rel (0) target = $region25
  $region24: #{lsv_pred_nn_forward.1} parent=0 // pred_region
    _
  $region25: #{lsv_pred_nn_forward.1} parent=0 // pred_fallthru
    _
  // Predicated region
  $region26: #{lsv_pred_nn_forward.1} parent=0 // pred_check
    _
  $region27: #{lsv_pred_nn_forward.1} parent=0 // pred_check_branch
    %25 = sbr.rel (0) target = $region29
  $region28: #{lsv_pred_nn_forward.1} parent=0 // pred_region
    _
  $region29: #{lsv_pred_nn_forward.1} parent=0 // pred_fallthru
    _
  %v27 = vld [vmem:[%s0] sm:$0xff]
  %v28 = vld [vmem:[%s0 + $0x8] sm:$0xff]
  %v29 = vld [vmem:[%s0 + $0x10] sm:$0xff]
  %v30 = vld [vmem:[%s0 + $0x18] sm:$0xff]
  %v31 = vld [vmem:[%s0 + $0x20] sm:$0xff]
  %v32 = vld [vmem:[%s0 + $0x28] sm:$0xff]
  %v33 = vld [vmem:[%s0 + $0x30] sm:$0xff]
  %v34 = vld [vmem:[%s0 + $0x38] sm:$0xff]
  %v35 = vld [vmem:[%s0 + $0x40] sm:$0xff]
  %v36 = vld [vmem:[%s0 + $0x48] sm:$0xff]
  %v37 = vld [vmem:[%s0 + $0x50] sm:$0xff]
  %v38 = vld [vmem:[%s0 + $0x58] sm:$0xff]
  %v39 = vld [vmem:[%s0 + $0x60] sm:$0xff]
  %v40 = vld [vmem:[%s0 + $0x68] sm:$0xff]
  %v41 = vld [vmem:[%s0 + $0x70] sm:$0xff]
  %v42 = vld [vmem:[%s0 + $0x78] sm:$0xff]
  %v43 = vpack.c.bf16 %v28, %v27
  %v44 = vpack.c.bf16 %v30, %v29
  %v45 = vpack.c.bf16 %v32, %v31
  %v46 = vpack.c.bf16 %v34, %v33
  %v47 = vpack.c.bf16 %v36, %v35
  %v48 = vpack.c.bf16 %v38, %v37
  %v49 = vpack.c.bf16 %v40, %v39
  %v50 = vpack.c.bf16 %v42, %v41
  %v51 = vld [vmem:[%s1] sm:$0xf]
  %v52 = vld [vmem:[%s1 + $0x4] sm:$0xf]
  %v53 = vld [vmem:[%s1 + $0x8] sm:$0xf]
  %v54 = vld [vmem:[%s1 + $0xc] sm:$0xf]
  %v55 = vld [vmem:[%s1 + $0x10] sm:$0x3]
  %v56 = vld [vmem:[%s2] sm:$0xff]
  %v57 = vld [vmem:[%s2 + $0x8] sm:$0xff]
  %v58 = vld [vmem:[%s2 + $0x10] sm:$0xff]
  %v59 = vld [vmem:[%s2 + $0x18] sm:$0xff]
  %v60 = vld [vmem:[%s2 + $0x20] sm:$0xf]
  %62 = vset.pattern.permute.xlu0 0
  %63 = vperm.xlu0 %62, %v56
  %v64 = vpop.permute.xlu0 %63
  %67 = vset.pattern.permute.xlu0 0
  %68 = vperm.xlu0 %67, %v57
  %v69 = vpop.permute.xlu0 %68
  %72 = vset.pattern.permute.xlu0 0
  %73 = vperm.xlu0 %72, %v58
  %v74 = vpop.permute.xlu0 %73
  %77 = vset.pattern.permute.xlu0 0
  %78 = vperm.xlu0 %77, %v59
  %v79 = vpop.permute.xlu0 %78
  %82 = vset.pattern.permute.xlu0 0
  %83 = vperm.xlu0 %82, %v60
  %v84 = vpop.permute.xlu0 %83
  %v91 = vunpack.c.l.b16 %v51
  %v92 = vunpack.c.l.b16 %v52
  %v93 = vunpack.c.l.b16 %v53
  %v94 = vunpack.c.l.b16 %v54
  %v95 = vunpack.c.l.b16 %v55
  %v96 = vpack.c.b16 %v92, %v91
  %v97 = vpack.c.b16 %v94, %v93
  %v98 = vpack.c.b16 %v95, %v95
  %vm99 = vcmask 261120
  %v101 = vsel %vm99, %v96, 0
  %v104 = vsel %vm99, %v97, 0
  %v107 = vsel %vm99, %v98, 0
  %v110 = vsel %vm99, %v43, 0
  %v113 = vsel %vm99, %v44, 0
  %v116 = vsel %vm99, %v45, 0
  %v119 = vsel %vm99, %v46, 0
  %v122 = vsel %vm99, %v47, 0
  %v125 = vsel %vm99, %v48, 0
  %v128 = vsel %vm99, %v49, 0
  %v131 = vsel %vm99, %v50, 0
  %133 = vmatpush.bf16.xpose.msra.mxu0 %v131
  %134 = vmatpush.bf16.xpose.msra.mxu0 %v128
  %135 = vmatpush.bf16.xpose.msra.mxu0 %v125
  %136 = vmatpush.bf16.xpose.msra.mxu0 %v122
  %137 = vmatpush.bf16.xpose.msra.mxu0 %v119
  %138 = vmatpush.bf16.xpose.msra.mxu0 %v116
  %139 = vmatpush.bf16.xpose.msra.mxu0 %v113
  %140 = vmatpush.bf16.xpose.msra.mxu0 %v110
  %141 = vmatmul.bf16.gmra.mxu0 %v101
  %v142 = vpop.f32.mrf.mxu0
  %v143 = vadd.f32 %v64, %v142
  %v144 = vpop.f32.mrf.mxu0
  %v145 = vadd.f32 %v69, %v144
  %146 = vmatmul.bf16.gmra.mxu0 %v104
  %v147 = vpop.f32.mrf.mxu0
  %v148 = vadd.f32 %v74, %v147
  %v149 = vpop.f32.mrf.mxu0
  %v150 = vadd.f32 %v79, %v149
  %151 = vmatmul.bf16.gmra.mxu0 %v107
  %v152 = vpop.f32.mrf.mxu0
  %v153 = vadd.f32 %v84, %v152
  %v154 = vpop.f32.mrf.mxu0
  %155 = vdwg.mxu0
  %v156 = vmax.f32 %v143, 0.0
  %v157 = vmax.f32 %v145, 0.0
  %v158 = vmax.f32 %v148, 0.0
  %v159 = vmax.f32 %v150, 0.0
  %v160 = vmax.f32 %v153, 0.0
  %v161 = vld [vmem:[%s3] sm:$0xf]
  %v162 = vld [vmem:[%s3 + $0x4] sm:$0xf]
  %v163 = vld [vmem:[%s3 + $0x8] sm:$0x1]
  %v164 = vpack.c.bf16 %v157, %v156
  %v165 = vpack.c.bf16 %v159, %v158
  %v166 = vpack.c.bf16 %v160, %v160
  %v167 = vld [vmem:[%s4] sm:$0xff]
  %v168 = vld [vmem:[%s4 + $0x8] sm:$0xff]
  %v169 = vld [vmem:[%s4 + $0x10] sm:$0x3]
  %171 = vset.pattern.permute.xlu0 0
  %172 = vperm.xlu0 %171, %v167
  %v173 = vpop.permute.xlu0 %172
  %176 = vset.pattern.permute.xlu0 0
  %177 = vperm.xlu0 %176, %v168
  %v178 = vpop.permute.xlu0 %177
  %181 = vset.pattern.permute.xlu0 0
  %182 = vperm.xlu0 %181, %v169
  %v183 = vpop.permute.xlu0 %182
  %v188 = vunpack.c.l.b16 %v161
  %v189 = vunpack.c.l.b16 %v162
  %v190 = vunpack.c.l.b16 %v163
  %v191 = vpack.c.b16 %v189, %v188
  %v192 = vpack.c.b16 %v190, %v190
  %vm193 = vcmask 293888
  %v195 = vsel %vm193, %v191, 0
  %v198 = vsel %vm193, %v192, 0
  %vm200 = vcmask 1041408
  %v202 = vsel %vm200, %v166, 0
  %204 = vmatpush.bf16.msra.mxu0 0
  %205 = vmatpush.bf16.msra.mxu0 0
  %206 = vmatpush.bf16.msra.mxu0 0
  %207 = vmatpush.bf16.msra.mxu0 0
  %208 = vmatpush.bf16.msra.mxu0 0
  %209 = vmatpush.bf16.msra.mxu0 %v202
  %210 = vmatpush.bf16.msra.mxu0 %v165
  %211 = vmatpush.bf16.msra.mxu0 %v164
  %212 = vmatmul.bf16.gmra.mxu0 %v195
  %v213 = vpop.f32.mrf.mxu0
  %v214 = vadd.f32 %v173, %v213
  %v215 = vpop.f32.mrf.mxu0
  %v216 = vadd.f32 %v178, %v215
  %217 = vmatmul.bf16.gmra.mxu0 %v198
  %v218 = vpop.f32.mrf.mxu0
  %v219 = vadd.f32 %v183, %v218
  %v220 = vpop.f32.mrf.mxu0
  %221 = vdwg.mxu0
  %v222 = vmax.f32 %v214, 0.0
  %v223 = vmax.f32 %v216, 0.0
  %v224 = vmax.f32 %v219, 0.0
  %v225 = vld [vmem:[%s5] sm:$0xf]
  %v226 = vld [vmem:[%s5 + $0x4] sm:$0x1]
  %v227 = vpack.c.bf16 %v223, %v222
  %v228 = vpack.c.bf16 %v224, %v224
  %v229 = vld [vmem:[%s6] sm:$0xff]
  %v230 = vld [vmem:[%s6 + $0x8] sm:$0x3]
  %232 = vset.pattern.permute.xlu0 0
  %233 = vperm.xlu0 %232, %v229
  %v234 = vpop.permute.xlu0 %233
  %237 = vset.pattern.permute.xlu0 0
  %238 = vperm.xlu0 %237, %v230
  %v239 = vpop.permute.xlu0 %238
  %v243 = vunpack.c.l.b16 %v225
  %v244 = vunpack.c.l.b16 %v226
  %v245 = vpack.c.b16 %v244, %v243
  %vm246 = vcmask 146432
  %v248 = vsel %vm246, %v245, 0
  %vm250 = vcmask 1040384
  %v252 = vsel %vm250, %v228, 0
  %254 = vmatpush.bf16.msra.mxu0 0
  %255 = vmatpush.bf16.msra.mxu0 0
  %256 = vmatpush.bf16.msra.mxu0 0
  %257 = vmatpush.bf16.msra.mxu0 0
  %258 = vmatpush.bf16.msra.mxu0 0
  %259 = vmatpush.bf16.msra.mxu0 0
  %260 = vmatpush.bf16.msra.mxu0 %v252
  %261 = vmatpush.bf16.msra.mxu0 %v227
  %262 = vmatmul.bf16.gmra.mxu0 %v248
  %v263 = vpop.f32.mrf.mxu0
  %v264 = vadd.f32 %v234, %v263
  %v265 = vpop.f32.mrf.mxu0
  %v266 = vadd.f32 %v239, %v265
  %267 = vdwg.mxu0
  %268 = vst [vmem:[%s7] sm:$0xff] %v264
  %269 = vst [vmem:[%s7 + $0x8] sm:$0x3] %v266
  // Predicated region
  $region30: #{lsv_pred_nn_forward.1} parent=0 // pred_check
    _
  $region31: #{lsv_pred_nn_forward.1} parent=0 // pred_check_branch
    %271 = sbr.rel (0) target = $region33
  $region32: #{lsv_pred_nn_forward.1} parent=0 // pred_region
    _
  $region33: #{lsv_pred_nn_forward.1} parent=0 // pred_fallthru
    _
  // Predicated region
  $region34: #{lsv_pred_nn_forward.1} parent=0 // pred_check
    _
  $region35: #{lsv_pred_nn_forward.1} parent=0 // pred_check_branch
    %273 = sbr.rel (0) target = $region37
  $region36: #{lsv_pred_nn_forward.1} parent=0 // pred_region
    _
  $region37: #{lsv_pred_nn_forward.1} parent=0 // pred_fallthru
    _

</llo_original>
